<compile_context>
chip_gen: v6e
topology: v6e:2x2x1
jax: 0.10.0
libtpu: 0.0.40
codegen_flags: <defaults>
</compile_context>

<pallas_src>
import jax
import jax.numpy as jnp
from jax.experimental import pallas as pl
from jax.experimental.pallas import tpu as pltpu

USER_DIM = SONG_DIM = 16
USER_CNT = 32
SONG_CNT = 64


def _linear_kernel(idx_ref, user_tab_ref, song_tab_ref, out_ref):
    idx = idx_ref[...]                  # (2, TB) int32: row 0 = user, row 1 = song
    u_row = idx[0:1, :]                 # (1, TB)
    s_row = idx[1:2, :]                 # (1, TB)
    user_tab = user_tab_ref[...]        # (Cu, D) bf16
    song_tab = song_tab_ref[...]        # (Cs, D) bf16

    tb = idx.shape[1]
    cu = user_tab.shape[0]
    cs = song_tab.shape[0]
    dt = user_tab_ref.dtype

    # One-hot selectors in lane-oriented layout (exactly representable in bf16).
    u_onehot = (
        jax.lax.broadcasted_iota(jnp.int32, (cu, tb), 0) == u_row
    ).astype(dt)                        # (Cu, TB)
    s_onehot = (
        jax.lax.broadcasted_iota(jnp.int32, (cs, tb), 0) == s_row
    ).astype(dt)                        # (Cs, TB)

    # Gather via MXU: u_emb[d, b] = user_tab[user_idx[b], d]   (D, TB)
    u_emb = jax.lax.dot_general(
        user_tab, u_onehot,
        dimension_numbers=(((0,), (0,)), ((), ())),
        preferred_element_type=jnp.float32,
    )
    s_emb = jax.lax.dot_general(
        song_tab, s_onehot,
        dimension_numbers=(((0,), (0,)), ((), ())),
        preferred_element_type=jnp.float32,
    )

    # Dot product per batch column: VPU multiply + 16-sublane XLU reduce.
    x = jnp.sum(u_emb * s_emb, axis=0, keepdims=True)   # (1, TB) lane-dense
    out_ref[...] = jnp.maximum(x, 0.0)


def linear_forward(user_idx, song_idx, user_table, song_table,
                   *, max_tile_b=4096, compute_dtype=jnp.bfloat16):
    """user_idx, song_idx: (B,) int -> (B,) float32 = relu(<u_emb, s_emb>)."""
    B = user_idx.shape[0]

    # tile_b: multiple of 128 (lane-aligned blocks).  Aim for >= 2 (even) tiles
    # so v7x's second TensorCore is fed via the "parallel" batch axis; cap at
    # max_tile_b so per-tile intermediates stay tiny on every generation.
    half = -(-B // 2)
    tile_b = min(max_tile_b, max(128, ((half + 127) // 128) * 128))
    num_tiles = pl.cdiv(B, tile_b)
    b_pad = num_tiles * tile_b

    # Packed, lane-dense index array; pad with index 0 (a valid row), padded
    # outputs are sliced off below.
    idx = jnp.zeros((2, b_pad), dtype=jnp.int32)
    idx = idx.at[0, :B].set(user_idx.astype(jnp.int32))
    idx = idx.at[1, :B].set(song_idx.astype(jnp.int32))

    # Cast tables once in the wrapper (not per tile) for bf16 MXU matmuls.
    user_tab = user_table.astype(compute_dtype)
    song_tab = song_table.astype(compute_dtype)
    cu, d = user_tab.shape
    cs, _ = song_tab.shape

    out = pl.pallas_call(
        _linear_kernel,
        out_shape=jax.ShapeDtypeStruct((1, b_pad), jnp.float32),
        grid=(num_tiles,),
        in_specs=[
            pl.BlockSpec((2, tile_b), lambda i: (0, i)),   # packed indices, tiled on B
            pl.BlockSpec((cu, d), lambda i: (0, 0)),       # full user table (VMEM-resident)
            pl.BlockSpec((cs, d), lambda i: (0, 0)),       # full song table (VMEM-resident)
        ],
        out_specs=pl.BlockSpec((1, tile_b), lambda i: (0, i)),
        compiler_params=pltpu.CompilerParams(
            dimension_semantics=("parallel",),
        ),
    )(idx, user_tab, song_tab)

    return out[0, :B]


if __name__ == "__main__":
    key = jax.random.PRNGKey(0)
    k_u, k_s, k_ui, k_si = jax.random.split(key, 4)

    # nn.Embedding default init: N(0, 1)
    user_table = jax.random.normal(k_u, (USER_CNT, USER_DIM), dtype=jnp.float32)
    song_table = jax.random.normal(k_s, (SONG_CNT, SONG_DIM), dtype=jnp.float32)

    B = 8
    user_idx = jax.random.randint(k_ui, (B,), 0, USER_CNT, dtype=jnp.int32)
    song_idx = jax.random.randint(k_si, (B,), 0, SONG_CNT, dtype=jnp.int32)

    out = linear_forward(user_idx, song_idx, user_table, song_table)
    out = jax.block_until_ready(out)

    # Reference matching the kernel's bf16 weight precision (the one-hot
    # gather + f32 accumulation are otherwise exact), so the check stays tight.
    ut_r = user_table.astype(jnp.bfloat16).astype(jnp.float32)
    st_r = song_table.astype(jnp.bfloat16).astype(jnp.float32)
    ref = jnp.maximum(jnp.sum(ut_r[user_idx] * st_r[song_idx], axis=1), 0.0)

    assert out.shape == (B,)
    assert jnp.allclose(out, ref, atol=1e-4, rtol=1e-4)

    print("KERNEL_OK")
</pallas_src>

<mosaic_0001>
module attributes {stable_mosaic.version = 11 : i64} {
  func.func @_linear_kernel(%arg0: i32, %arg1: memref<2x128xi32, #tpu.memory_space<vmem>>, %arg2: memref<32x16xbf16, #tpu.memory_space<vmem>>, %arg3: memref<64x16xbf16, #tpu.memory_space<vmem>>, %arg4: memref<1x128xf32, #tpu.memory_space<vmem>>) attributes {dimension_semantics = [#tpu.dimension_semantics<parallel>], iteration_bounds = array<i64: 1>, scalar_prefetch = 0 : i64, scratch_operands = 0 : i64, tpu.core_type = #tpu.core_type<tc>, window_params = [{transform_indices = @transform_0, window_bounds = array<i64: 2, 128>}, {pipeline_mode = #tpu.pipeline_mode<synchronous>, transform_indices = @transform_1, window_bounds = array<i64: 32, 16>}, {pipeline_mode = #tpu.pipeline_mode<synchronous>, transform_indices = @transform_2, window_bounds = array<i64: 64, 16>}, {transform_indices = @transform_3, window_bounds = array<i64: 1, 128>}]} {
    %c0 = arith.constant 0 : index
    %c0_0 = arith.constant 0 : index
    %0 = vector.load %arg1[%c0, %c0_0] : memref<2x128xi32, #tpu.memory_space<vmem>>, vector<2x128xi32>
    %1 = vector.extract_strided_slice %0 {offsets = [0, 0], sizes = [1, 128], strides = [1, 1]} : vector<2x128xi32> to vector<1x128xi32>
    %2 = vector.extract_strided_slice %0 {offsets = [1, 0], sizes = [1, 128], strides = [1, 1]} : vector<2x128xi32> to vector<1x128xi32>
    %c0_1 = arith.constant 0 : index
    %c0_2 = arith.constant 0 : index
    %3 = vector.load %arg2[%c0_1, %c0_2] : memref<32x16xbf16, #tpu.memory_space<vmem>>, vector<32x16xbf16>
    %c0_3 = arith.constant 0 : index
    %c0_4 = arith.constant 0 : index
    %4 = vector.load %arg3[%c0_3, %c0_4] : memref<64x16xbf16, #tpu.memory_space<vmem>>, vector<64x16xbf16>
    %5 = tpu.iota {dimensions = array<i32: 0>} : vector<32x128xi32>
    %6 = vector.broadcast %1 : vector<1x128xi32> to vector<32x128xi32>
    %7 = arith.cmpi eq, %5, %6 : vector<32x128xi32>
    %8 = arith.extui %7 : vector<32x128xi1> to vector<32x128xi32>
    %9 = arith.sitofp %8 : vector<32x128xi32> to vector<32x128xf32>
    %10 = arith.truncf %9 : vector<32x128xf32> to vector<32x128xbf16>
    %11 = tpu.iota {dimensions = array<i32: 0>} : vector<64x128xi32>
    %12 = vector.broadcast %2 : vector<1x128xi32> to vector<64x128xi32>
    %13 = arith.cmpi eq, %11, %12 : vector<64x128xi32>
    %14 = arith.extui %13 : vector<64x128xi1> to vector<64x128xi32>
    %15 = arith.sitofp %14 : vector<64x128xi32> to vector<64x128xf32>
    %16 = arith.truncf %15 : vector<64x128xf32> to vector<64x128xbf16>
    %cst = arith.constant dense<0.000000e+00> : vector<16x128xf32>
    %17 = tpu.matmul %3, %10, %cst {dimension_numbers = #tpu.dot_dimension_numbers<[0], [0], [1], [1], [0, 1, 1, 1], [], []>} : vector<32x16xbf16>, vector<32x128xbf16>, vector<16x128xf32> -> vector<16x128xf32>
    %cst_5 = arith.constant dense<0.000000e+00> : vector<16x128xf32>
    %18 = tpu.matmul %4, %16, %cst_5 {dimension_numbers = #tpu.dot_dimension_numbers<[0], [0], [1], [1], [0, 1, 1, 1], [], []>} : vector<64x16xbf16>, vector<64x128xbf16>, vector<16x128xf32> -> vector<16x128xf32>
    %19 = arith.mulf %17, %18 : vector<16x128xf32>
    %cst_6 = arith.constant dense<0.000000e+00> : vector<128xf32>
    %20 = vector.multi_reduction <add>, %19, %cst_6 [0] : vector<16x128xf32> to vector<128xf32>
    %21 = vector.shape_cast %20 : vector<128xf32> to vector<1x128xf32>
    %cst_7 = arith.constant 0.000000e+00 : f32
    %22 = vector.broadcast %cst_7 : f32 to vector<1x128xf32>
    %23 = arith.maximumf %21, %22 : vector<1x128xf32>
    %c0_8 = arith.constant 0 : index
    %c0_9 = arith.constant 0 : index
    %24 = vector.load %arg4[%c0_8, %c0_9] : memref<1x128xf32, #tpu.memory_space<vmem>>, vector<1x128xf32>
    tpu.vector_store %arg4[%c0_8, %c0_9], %23 {strides = array<i32>} : memref<1x128xf32, #tpu.memory_space<vmem>>, vector<1x128xf32>,
    return
  }
  func.func @transform_0(%arg0: i32) -> (i32, i32) {
    %c0_i32 = arith.constant 0 : i32
    %c0_i32_0 = arith.constant 0 : i32
    return %c0_i32, %arg0 : i32, i32
  }
  func.func @transform_1(%arg0: i32) -> (i32, i32) {
    %c0_i32 = arith.constant 0 : i32
    %c0_i32_0 = arith.constant 0 : i32
    %c0_i32_1 = arith.constant 0 : i32
    return %c0_i32, %c0_i32_0 : i32, i32
  }
  func.func @transform_2(%arg0: i32) -> (i32, i32) {
    %c0_i32 = arith.constant 0 : i32
    %c0_i32_0 = arith.constant 0 : i32
    %c0_i32_1 = arith.constant 0 : i32
    return %c0_i32, %c0_i32_0 : i32, i32
  }
  func.func @transform_3(%arg0: i32) -> (i32, i32) {
    %c0_i32 = arith.constant 0 : i32
    %c0_i32_0 = arith.constant 0 : i32
    return %c0_i32, %arg0 : i32, i32
  }
}

</mosaic_0001>

<llo_original>
// kernel: tpu_custom_call.1
$region0: #{tpu_custom_call.1}
  #allocation0 [shape = 'u32[]', space=smem, size = 0x4, offset = 0x4, fixed_abs, tag = 'smem constant byte address 0x4 - core index']
  #allocation1 [shape = 'u32[144,128]{1,0:T(1,128)}', space=vmem, size = 0x12000, scoped, tag = 'internal scratch']
  %s0 = inlined_call_operand.vmem [shape: s32[2,128], index: 0, kind: input, shape index: {}]
  %s1 = inlined_call_operand.vmem [shape: bf16[32,16], index: 1, kind: input, shape index: {}]
  %s2 = inlined_call_operand.vmem [shape: bf16[64,16], index: 2, kind: input, shape index: {}]
  %s3 = inlined_call_operand.hbm [shape: f32[1,128], index: 3, kind: output, shape index: {}]
  %s4 = sld [smem:[#allocation0]]
  $region22: #{tpu_custom_call.1} parent=0
    _
  %s6 = ssub.s32 1, %s4
  %s7 = scalar_select 0, %s6, %s4
  $region1: #{tpu_custom_call.1} parent=0
    #allocation2 [shape = 'u8[512]{0}', space=vmem, size = 0x400, scoped, tag = 'output window, operand 0, single buffered']
    #allocation3 [shape = 's32[1]{0}', space=sflag, size = 0x4, scoped, tag = 'scoped memory for tpu_custom_call.1']
    %8 = vsyncpa [#allocation3], 0
    // Predicated region
    $region2: #{tpu_custom_call.1} parent=1 // pred_check
      _
    $region3: #{tpu_custom_call.1} parent=1 // pred_check_branch
      %10 = sbr.rel (0) target = $region5
    $region4: #{tpu_custom_call.1} parent=1 // pred_region
      _
    $region5: #{tpu_custom_call.1} parent=1 // pred_fallthru
      _
    // Predicated region
    $region6: #{tpu_custom_call.1} parent=1 // pred_check
      _
    $region7: #{tpu_custom_call.1} parent=1 // pred_check_branch
      %12 = sbr.rel (0) target = $region9
    $region8: #{tpu_custom_call.1} parent=1 // pred_region
      _
    $region9: #{tpu_custom_call.1} parent=1 // pred_fallthru
      _
    // Predicated region
    $region10: #{tpu_custom_call.1} parent=1 // pred_check
      _
    $region11: #{tpu_custom_call.1} parent=1 // pred_check_branch
      %14 = sbr.rel (0) target = $region13
    $region12: #{tpu_custom_call.1} parent=1 // pred_region
      _
    $region13: #{tpu_custom_call.1} parent=1 // pred_fallthru
      _
    %v16 = vld [vmem:[%s0] sm:$0x3]
    %v17 = vld [vmem:[%s1] sm:$0xf]
    %v18 = vld [vmem:[%s1 + $0x4] sm:$0xf]
    %v19 = vld [vmem:[%s1 + $0x8] sm:$0xf]
    %v20 = vld [vmem:[%s1 + $0xc] sm:$0xf]
    %v21 = vld [vmem:[%s2] sm:$0xf]
    %v22 = vld [vmem:[%s2 + $0x4] sm:$0xf]
    %v23 = vld [vmem:[%s2 + $0x8] sm:$0xf]
    %v24 = vld [vmem:[%s2 + $0xc] sm:$0xf]
    %v25 = vld [vmem:[%s2 + $0x10] sm:$0xf]
    %v26 = vld [vmem:[%s2 + $0x14] sm:$0xf]
    %v27 = vld [vmem:[%s2 + $0x18] sm:$0xf]
    %v28 = vld [vmem:[%s2 + $0x1c] sm:$0xf]
    %v29 = vlaneseq
    %v30 = vshrl.u32 %v29, 7
    %v31 = vadd.s32 %v30, 8
    %v32 = vadd.s32 %v30, 16
    %v33 = vadd.s32 %v30, 24
    %v34 = vlaneseq
    %v35 = vshrl.u32 %v34, 7
    %v36 = vsub.s32 0, %v35
    %v37 = vrot.slane %v16, %v36
    %vm38 = vcmp.eq.s32.totalorder %v30, %v37
    %vm39 = vcmp.eq.s32.totalorder %v31, %v37
    %vm40 = vcmp.eq.s32.totalorder %v32, %v37
    %vm41 = vcmp.eq.s32.totalorder %v33, %v37
    %v42 = vsel %vm38, 1, 0
    %v43 = vsel %vm39, 1, 0
    %v44 = vsel %vm40, 1, 0
    %v45 = vsel %vm41, 1, 0
    %v46 = vcvt.s32.f32 %v42
    %v47 = vcvt.s32.f32 %v43
    %v48 = vcvt.s32.f32 %v44
    %v49 = vcvt.s32.f32 %v45
    %v50 = vpack.c.bf16 %v47, %v46
    %v51 = vpack.c.bf16 %v49, %v48
    %v52 = vadd.s32 %v30, 32
    %v53 = vadd.s32 %v30, 40
    %v54 = vadd.s32 %v30, 48
    %v55 = vadd.s32 %v30, 56
    %v56 = vlaneseq
    %v57 = vshrl.u32 %v56, 7
    %v58 = vsub.s32 1, %v57
    %v59 = vrot.slane %v16, %v58
    %vm60 = vcmp.eq.s32.totalorder %v30, %v59
    %vm61 = vcmp.eq.s32.totalorder %v31, %v59
    %vm62 = vcmp.eq.s32.totalorder %v32, %v59
    %vm63 = vcmp.eq.s32.totalorder %v33, %v59
    %vm64 = vcmp.eq.s32.totalorder %v52, %v59
    %vm65 = vcmp.eq.s32.totalorder %v53, %v59
    %vm66 = vcmp.eq.s32.totalorder %v54, %v59
    %vm67 = vcmp.eq.s32.totalorder %v55, %v59
    %v68 = vsel %vm60, 1, 0
    %v69 = vsel %vm61, 1, 0
    %v70 = vsel %vm62, 1, 0
    %v71 = vsel %vm63, 1, 0
    %v72 = vsel %vm64, 1, 0
    %v73 = vsel %vm65, 1, 0
    %v74 = vsel %vm66, 1, 0
    %v75 = vsel %vm67, 1, 0
    %v76 = vcvt.s32.f32 %v68
    %v77 = vcvt.s32.f32 %v69
    %v78 = vcvt.s32.f32 %v70
    %v79 = vcvt.s32.f32 %v71
    %v80 = vcvt.s32.f32 %v72
    %v81 = vcvt.s32.f32 %v73
    %v82 = vcvt.s32.f32 %v74
    %v83 = vcvt.s32.f32 %v75
    %v84 = vpack.c.bf16 %v77, %v76
    %v85 = vpack.c.bf16 %v79, %v78
    %v86 = vpack.c.bf16 %v81, %v80
    %v87 = vpack.c.bf16 %v83, %v82
    %v92 = vunpack.c.l.b16 %v17
    %v93 = vunpack.c.l.b16 %v18
    %v94 = vunpack.c.l.b16 %v19
    %v95 = vunpack.c.l.b16 %v20
    %v96 = vpack.c.b16 %v93, %v92
    %v97 = vpack.c.b16 %v95, %v94
    %100 = vxpose.xlu0.c.b16.start [1/8] %v96, 128
    %101 = vxpose.xlu0.c.b16.cont [2/8] %v97, 128
    %102 = vxpose.xlu0.c.b16.cont [3/8] 0, 128
    %103 = vxpose.xlu0.c.b16.cont [4/8] 0, 128
    %104 = vxpose.xlu0.c.b16.cont [5/8] 0, 128
    %105 = vxpose.xlu0.c.b16.cont [6/8] 0, 128
    %106 = vxpose.xlu0.c.b16.cont [7/8] 0, 128
    %107 = vxpose.xlu0.c.b16.end [8/8] 0, 128
    %v108 = vpop.trf.xlu0
    %v109 = vpop.trf.xlu0
    %v110 = vpop.trf.xlu0
    %v111 = vpop.trf.xlu0
    %v112 = vpop.trf.xlu0
    %v113 = vpop.trf.xlu0
    %v114 = vpop.trf.xlu0
    %v115 = vpop.trf.xlu0
    %vm116 = vcmask 261120
    %v118 = vsel %vm116, %v108, 0
    %120 = vmatprep.subr.bf16.mxu0 0
    %121 = vmatpush1.bf16.msra.mxu0 0
    %122 = vmatprep.subr.bf16.mxu0 0
    %123 = vmatpush1.bf16.msra.mxu0 0
    %124 = vmatprep.subr.bf16.mxu0 0
    %125 = vmatpush1.bf16.msra.mxu0 0
    %126 = vmatprep.subr.bf16.mxu0 0
    %127 = vmatpush1.bf16.msra.mxu0 0
    %128 = vmatprep.subr.bf16.mxu0 0
    %129 = vmatpush1.bf16.msra.mxu0 0
    %130 = vmatprep.subr.bf16.mxu0 0
    %131 = vmatpush1.bf16.msra.mxu0 0
    %132 = vmatprep.subr.bf16.mxu0 0
    %133 = vmatpush1.bf16.msra.mxu0 %v51
    %134 = vmatprep.subr.bf16.mxu0 0
    %135 = vmatpush1.bf16.msra.mxu0 %v50
    %136 = vmatprep.subr.bf16.mxu0 0
    %137 = vmatpush2.bf16.msra.mxu0 0
    %138 = vmatprep.subr.bf16.mxu0 0
    %139 = vmatpush2.bf16.msra.mxu0 0
    %140 = vmatprep.subr.bf16.mxu0 0
    %141 = vmatpush2.bf16.msra.mxu0 0
    %142 = vmatprep.subr.bf16.mxu0 0
    %143 = vmatpush2.bf16.msra.mxu0 0
    %144 = vmatprep.subr.bf16.mxu0 0
    %145 = vmatpush2.bf16.msra.mxu0 0
    %146 = vmatprep.subr.bf16.mxu0 0
    %147 = vmatpush2.bf16.msra.mxu0 0
    %148 = vmatprep.subr.bf16.mxu0 0
    %149 = vmatpush2.bf16.msra.mxu0 0
    %150 = vmatprep.subr.bf16.mxu0 0
    %151 = vmatpush2.bf16.msra.mxu0 0
    %152 = vmatprep.mubr.bf16.mxu0 0
    %153 = vmatmul.mubr.bf16.gmra.mxu0 %v118
    %v154 = vpop.f32.mrf.mxu0
    %v155 = vadd.f32 0.0, %v154
    %v156 = vpop.f32.mrf.mxu0
    %v157 = vpop.f32.mrf.mxu0
    %v158 = vadd.f32 0.0, %v157
    %v159 = vpop.f32.mrf.mxu0
    %160 = vdwg.mxu0
    %v169 = vunpack.c.l.b16 %v21
    %v170 = vunpack.c.l.b16 %v22
    %v171 = vunpack.c.l.b16 %v23
    %v172 = vunpack.c.l.b16 %v24
    %v173 = vunpack.c.l.b16 %v25
    %v174 = vunpack.c.l.b16 %v26
    %v175 = vunpack.c.l.b16 %v27
    %v176 = vunpack.c.l.b16 %v28
    %v177 = vpack.c.b16 %v170, %v169
    %v178 = vpack.c.b16 %v172, %v171
    %v179 = vpack.c.b16 %v174, %v173
    %v180 = vpack.c.b16 %v176, %v175
    %185 = vxpose.xlu0.c.b16.start [1/8] %v177, 128
    %186 = vxpose.xlu0.c.b16.cont [2/8] %v178, 128
    %187 = vxpose.xlu0.c.b16.cont [3/8] %v179, 128
    %188 = vxpose.xlu0.c.b16.cont [4/8] %v180, 128
    %189 = vxpose.xlu0.c.b16.cont [5/8] 0, 128
    %190 = vxpose.xlu0.c.b16.cont [6/8] 0, 128
    %191 = vxpose.xlu0.c.b16.cont [7/8] 0, 128
    %192 = vxpose.xlu0.c.b16.end [8/8] 0, 128
    %v193 = vpop.trf.xlu0
    %v194 = vpop.trf.xlu0
    %v195 = vpop.trf.xlu0
    %v196 = vpop.trf.xlu0
    %v197 = vpop.trf.xlu0
    %v198 = vpop.trf.xlu0
    %v199 = vpop.trf.xlu0
    %v200 = vpop.trf.xlu0
    %vm201 = vcmask 523264
    %v203 = vsel %vm201, %v193, 0
    %205 = vmatprep.subr.bf16.mxu0 0
    %206 = vmatpush1.bf16.msra.mxu0 0
    %207 = vmatprep.subr.bf16.mxu0 0
    %208 = vmatpush1.bf16.msra.mxu0 0
    %209 = vmatprep.subr.bf16.mxu0 0
    %210 = vmatpush1.bf16.msra.mxu0 0
    %211 = vmatprep.subr.bf16.mxu0 0
    %212 = vmatpush1.bf16.msra.mxu0 0
    %213 = vmatprep.subr.bf16.mxu0 0
    %214 = vmatpush1.bf16.msra.mxu0 %v87
    %215 = vmatprep.subr.bf16.mxu0 0
    %216 = vmatpush1.bf16.msra.mxu0 %v86
    %217 = vmatprep.subr.bf16.mxu0 0
    %218 = vmatpush1.bf16.msra.mxu0 %v85
    %219 = vmatprep.subr.bf16.mxu0 0
    %220 = vmatpush1.bf16.msra.mxu0 %v84
    %221 = vmatprep.subr.bf16.mxu0 0
    %222 = vmatpush2.bf16.msra.mxu0 0
    %223 = vmatprep.subr.bf16.mxu0 0
    %224 = vmatpush2.bf16.msra.mxu0 0
    %225 = vmatprep.subr.bf16.mxu0 0
    %226 = vmatpush2.bf16.msra.mxu0 0
    %227 = vmatprep.subr.bf16.mxu0 0
    %228 = vmatpush2.bf16.msra.mxu0 0
    %229 = vmatprep.subr.bf16.mxu0 0
    %230 = vmatpush2.bf16.msra.mxu0 0
    %231 = vmatprep.subr.bf16.mxu0 0
    %232 = vmatpush2.bf16.msra.mxu0 0
    %233 = vmatprep.subr.bf16.mxu0 0
    %234 = vmatpush2.bf16.msra.mxu0 0
    %235 = vmatprep.subr.bf16.mxu0 0
    %236 = vmatpush2.bf16.msra.mxu0 0
    %237 = vmatprep.mubr.bf16.mxu0 0
    %238 = vmatmul.mubr.bf16.gmra.mxu0 %v203
    %v239 = vpop.f32.mrf.mxu0
    %v240 = vadd.f32 0.0, %v239
    %v241 = vpop.f32.mrf.mxu0
    %v242 = vpop.f32.mrf.mxu0
    %v243 = vadd.f32 0.0, %v242
    %v244 = vpop.f32.mrf.mxu0
    %245 = vdwg.mxu0
    %v246 = vmul.f32 %v155, %v240
    %v247 = vmul.f32 %v158, %v243
    %v248 = vadd.f32 %v246, %v247
    %v249 = vrot.slane %v248, 4
    %v250 = vadd.f32 %v248, %v249
    %v251 = vrot.slane %v250, 2
    %v252 = vadd.f32 %v250, %v251
    %v253 = vrot.slane %v252, 1
    %v254 = vadd.f32 %v252, %v253
    %v255 = vmax.f32 %v254, 0.0
    %256 = vst [vmem:[#allocation2] sm:$0x1] %v255
    // Predicated region
    $region14: #{tpu_custom_call.1} parent=1 // pred_check
      _
    $region15: #{tpu_custom_call.1} parent=1 // pred_check_branch
      %258 = sbr.rel (0) target = $region17
    $region16: #{tpu_custom_call.1} parent=1 // pred_region
      %s260 = ssub.s32 16, 16
      %261 = vsyncadd [#allocation3], %s260
      %s263 = sshll.u32 [#allocation2], 4
      %s264 = int_to_ptr.vmem [resolvable:$true] %s263
      %266 = dma.vmem_to_hbm [thread:$0]  %s264, 16, %s3, [#allocation3]
    $region17: #{tpu_custom_call.1} parent=1 // pred_fallthru
      _
    // Predicated region
    $region18: #{tpu_custom_call.1} parent=1 // pred_check
      _
    $region19: #{tpu_custom_call.1} parent=1 // pred_check_branch
      %268 = sbr.rel (0) target = $region21
    $region20: #{tpu_custom_call.1} parent=1 // pred_region
      %269 = dma.done [#allocation3], 16
    $region21: #{tpu_custom_call.1} parent=1 // pred_fallthru
      _
    %270 = vsyncpa [#allocation3], 1

</llo_original>
